<compile_context>
chip_gen: v5e
topology: v5e:2x2
jax: 0.10.0
libtpu: 0.0.40
codegen_flags: <defaults>
</compile_context>

<pallas_src>
import functools

import jax
import jax.numpy as jnp
from jax import lax
from jax.experimental import pallas as pl
from jax.experimental.pallas import tpu as pltpu

_LANE = 128


def _round_up(x, m):
    return (x + m - 1) // m * m


def _itemsize(dt):
    return jnp.dtype(dt).itemsize


def _physical_vmem_bytes():
    try:
        return int(pltpu.get_tpu_info().vmem_capacity_bytes)
    except Exception:
        return 64 * 1024 * 1024  # v7x per-core VMEM: smallest of the current generations.


# ---------------------------------------------------------------------------
# Path 1: (kh, kw, C_in) packed into lanes -> conv == one matmul + bias (+ReLU)
# ---------------------------------------------------------------------------
def _matmul_bias_act_kernel(x_ref, w_ref, b_ref, o_ref, *, act):
    # x_ref: (TM, Cpk) packed pixels; w_ref: (Cpk, Cout_p); b_ref: (1, Cout_p) f32
    acc = jnp.dot(x_ref[...], w_ref[...], preferred_element_type=jnp.float32)
    acc = acc + b_ref[...]
    if act:
        acc = jnp.maximum(acc, 0.0)
    o_ref[...] = acc.astype(o_ref.dtype)


# ---------------------------------------------------------------------------
# Path 2: direct conv, K*K taps, local f32 accumulation (no VMEM scratch)
# ---------------------------------------------------------------------------
def _conv_taps_kernel(x_ref, w_ref, b_ref, o_ref, *, TH, W, K, act):
    # x_ref: (1, Hp, Wp, Cin_p)  whole zero-padded image of this batch element
    # w_ref: (K, K, Cin_p, Cout_p);  b_ref: (1, Cout_p) f32;  o_ref: (1, TH, W, Cout_p)
    cin_p = x_ref.shape[-1]
    cout_p = o_ref.shape[-1]
    row0 = pl.multiple_of(pl.program_id(1) * TH, TH)

    acc = None
    for kh in range(K):
        for kw in range(K):
            # TODO(synk): replace the unaligned kw sublane slice with a per-kh
            # full-width slab load + pltpu.roll along W (XLU slot) once verified
            # to lower cleanly on all target generations.
            patch = x_ref[0, pl.ds(row0 + kh, TH), kw:kw + W, :]
            tap = jnp.dot(patch.reshape(TH * W, cin_p), w_ref[kh, kw],
                          preferred_element_type=jnp.float32)
            acc = tap if acc is None else acc + tap

    out = acc + b_ref[...]
    if act:
        out = jnp.maximum(out, 0.0)
    o_ref[0] = out.reshape(TH, W, cout_p).astype(o_ref.dtype)


def _pick_row_tile(H, W, cout_p, row_tile):
    if row_tile is not None:
        if H % row_tile != 0:
            raise ValueError(f"row_tile={row_tile} must divide H={H}")
        return row_tile
    best = 1
    for d in range(1, H + 1):
        # Target TH*W in the ~256-1024 range while keeping the f32 accumulator <= 2 MiB.
        if H % d == 0 and d * W <= 1024 and d * W * cout_p * 4 <= (2 << 20):
            best = d
    return best


@functools.partial(jax.jit, static_argnames=("act", "compute_dtype", "row_tile"))
def conv2d_pallas(x_nchw, w_oihw, bias, *, act=True, compute_dtype=None, row_tile=None):
    """Equivalent of nn.Conv2d(in_ch, out_ch, K, padding=K//2) (+ ReLU if act).

    x_nchw : (N, C_in, H, W)      (PyTorch layout)
    w_oihw : (C_out, C_in, K, K)  (PyTorch layout)
    bias   : (C_out,)
    """
    N, C_in, H, W = x_nchw.shape
    C_out, _, K, K2 = w_oihw.shape
    assert K == K2 and K % 2 == 1, "only odd kernel sizes give 'same' output"
    pad = K // 2

    in_dtype = x_nchw.dtype
    # bf16 is MXU-native on v5e/v6e/v7x; accumulation/epilogue stays f32.
    cdt = jnp.bfloat16 if compute_dtype is None else compute_dtype
    cout_p = _round_up(C_out, _LANE)
    vmem_cap = _physical_vmem_bytes()

    # Layout glue stays in the jitted wrapper so XLA fuses it into one pass.
    # TODO(synk): keep activations in padded NHWC between layers to avoid the
    # NCHW<->NHWC transposes / channel strip when chaining conv layers.
    x_nhwc = jnp.transpose(x_nchw, (0, 2, 3, 1))
    w_hwio = jnp.transpose(w_oihw, (2, 3, 1, 0))
    b_p = jnp.pad(bias.astype(jnp.float32), (0, cout_p - C_out)).reshape(1, cout_p)

    if K * K * C_in <= _LANE:
        # ---------------- packed path: conv as a single matmul ----------------
        cpk = _LANE
        x_sp = jnp.pad(x_nhwc, ((0, 0), (pad, pad), (pad, pad), (0, 0)))
        parts = [x_sp[:, kh:kh + H, kw:kw + W, :] for kh in range(K) for kw in range(K)]
        xpack = jnp.concatenate(parts, axis=-1)                    # (N, H, W, K*K*Cin)
        xpack = jnp.pad(xpack, ((0, 0), (0, 0), (0, 0), (0, cpk - K * K * C_in)))
        M = N * H * W
        TM = min(1024, _round_up(M, 8))
        Mp = _round_up(M, TM)
        x2d = jnp.pad(xpack.reshape(M, cpk), ((0, Mp - M), (0, 0))).astype(cdt)
        wpack = w_hwio.reshape(K * K * C_in, C_out)                # (kh*K+kw)*Cin+ci order
        wpack = jnp.pad(wpack, ((0, cpk - K * K * C_in), (0, cout_p - C_out))).astype(cdt)

        need = (2 * TM * cpk * _itemsize(cdt)
                + 2 * cpk * cout_p * _itemsize(cdt)
                + 2 * TM * cout_p * _itemsize(in_dtype)
                + 2 * cout_p * 4 + (4 << 20))
        vmem_limit = int(min(max(need, 32 << 20), vmem_cap))

        out2d = pl.pallas_call(
            functools.partial(_matmul_bias_act_kernel, act=act),
            out_shape=jax.ShapeDtypeStruct((Mp, cout_p), in_dtype),
            grid_spec=pltpu.PrefetchScalarGridSpec(
                num_scalar_prefetch=0,
                grid=(Mp // TM,),
                in_specs=[
                    pl.BlockSpec((TM, cpk), lambda i: (i, 0)),
                    pl.BlockSpec((cpk, cout_p), lambda i: (0, 0)),
                    pl.BlockSpec((1, cout_p), lambda i: (0, 0)),
                ],
                out_specs=pl.BlockSpec((TM, cout_p), lambda i: (i, 0)),
            ),
            compiler_params=pltpu.CompilerParams(
                dimension_semantics=("parallel",),
                vmem_limit_bytes=vmem_limit,
            ),
        )(x2d, wpack, b_p)
        out_nhwc = out2d[:M].reshape(N, H, W, cout_p)
    else:
        # ---------------- general path: K*K taps, local accumulation ----------------
        cin_p = _round_up(C_in, _LANE)
        Hp, Wp = H + 2 * pad, W + 2 * pad
        x_p = jnp.pad(x_nhwc, ((0, 0), (pad, pad), (pad, pad), (0, cin_p - C_in))).astype(cdt)
        w_p = jnp.pad(w_hwio, ((0, 0), (0, 0), (0, cin_p - C_in), (0, cout_p - C_out))).astype(cdt)
        TH = _pick_row_tile(H, W, cout_p, row_tile)

        img_bytes = Hp * Wp * cin_p * _itemsize(cdt)
        w_bytes = K * K * cin_p * cout_p * _itemsize(cdt)
        out_blk = TH * W * cout_p * _itemsize(in_dtype)
        acc_bytes = TH * W * cout_p * 4
        need = (2 * img_bytes + 2 * w_bytes + 2 * out_blk + acc_bytes
                + 2 * cout_p * 4 + (4 << 20))
        if need > vmem_cap:
            # TODO(synk): for images too large for whole-image VMEM residency, manually
            # double-buffer a halo'd (TH+K-1, Wp, Cin_p) row slab via memory_space=pl.ANY
            # + pltpu.make_async_copy instead of failing.
            raise ValueError(
                f"padded image residency needs ~{need} bytes of VMEM (> {vmem_cap}); "
                "reduce image/channel size or use smaller compute_dtype")
        vmem_limit = int(min(max(need, 32 << 20), vmem_cap))

        out_nhwc = pl.pallas_call(
            functools.partial(_conv_taps_kernel, TH=TH, W=W, K=K, act=act),
            out_shape=jax.ShapeDtypeStruct((N, H, W, cout_p), in_dtype),
            grid_spec=pltpu.PrefetchScalarGridSpec(
                num_scalar_prefetch=0,
                grid=(N, H // TH),
                in_specs=[
                    # Whole padded image; block index depends only on n, so it stays
                    # resident across the row-tile axis.
                    pl.BlockSpec((1, Hp, Wp, cin_p), lambda n, h: (n, 0, 0, 0)),
                    pl.BlockSpec((K, K, cin_p, cout_p), lambda n, h: (0, 0, 0, 0)),
                    pl.BlockSpec((1, cout_p), lambda n, h: (0, 0)),
                ],
                out_specs=pl.BlockSpec((1, TH, W, cout_p), lambda n, h: (n, h, 0, 0)),
            ),
            compiler_params=pltpu.CompilerParams(
                # Don't shard the row-tile axis across v7x cores (image is per-n resident).
                dimension_semantics=("parallel", "arbitrary"),
                vmem_limit_bytes=vmem_limit,
            ),
        )(x_p, w_p, b_p)

    # Strip channel padding and return PyTorch NCHW layout.
    return jnp.transpose(out_nhwc[..., :C_out], (0, 3, 1, 2))


if __name__ == "__main__":
    def ref_conv(x, w, b, act):
        p = w.shape[-1] // 2
        y = lax.conv_general_dilated(
            x, w, window_strides=(1, 1), padding=[(p, p), (p, p)],
            dimension_numbers=("NCHW", "OIHW", "NCHW"),
            precision=lax.Precision.HIGHEST)
        y = y + b[None, :, None, None]
        return jnp.maximum(y, 0.0) if act else y

    key = jax.random.PRNGKey(0)

    # Case 1: small C_in -> packed (single-matmul) path.  nn.Conv2d(4, 8, 3) + ReLU.
    k1, k2, k3, key = jax.random.split(key, 4)
    x1 = jax.random.normal(k1, (2, 4, 16, 16), dtype=jnp.float32)
    w1 = jax.random.normal(k2, (8, 4, 3, 3), dtype=jnp.float32) * 0.1
    b1 = jax.random.normal(k3, (8,), dtype=jnp.float32) * 0.1

    ref1 = ref_conv(x1, w1, b1, True)
    out1_f32 = jax.block_until_ready(
        conv2d_pallas(x1, w1, b1, act=True, compute_dtype=jnp.float32))
    assert out1_f32.shape == ref1.shape
    assert jnp.allclose(out1_f32, ref1, atol=2e-3, rtol=2e-3)
    out1_bf16 = jax.block_until_ready(conv2d_pallas(x1, w1, b1, act=True))
    assert jnp.allclose(out1_bf16, ref1, atol=0.2, rtol=0.05)

    # Case 2: larger C_in -> general (K*K tap) path.  nn.Conv2d(32, 16, 3), no ReLU.
    k1, k2, k3, key = jax.random.split(key, 4)
    x2 = jax.random.normal(k1, (2, 32, 16, 16), dtype=jnp.float32)
    w2 = jax.random.normal(k2, (16, 32, 3, 3), dtype=jnp.float32) * 0.1
    b2 = jax.random.normal(k3, (16,), dtype=jnp.float32) * 0.1

    ref2 = ref_conv(x2, w2, b2, False)
    out2_f32 = jax.block_until_ready(
        conv2d_pallas(x2, w2, b2, act=False, compute_dtype=jnp.float32))
    assert out2_f32.shape == ref2.shape
    assert jnp.allclose(out2_f32, ref2, atol=2e-3, rtol=2e-3)
    out2_bf16 = jax.block_until_ready(conv2d_pallas(x2, w2, b2, act=False))
    assert jnp.allclose(out2_bf16, ref2, atol=0.3, rtol=0.05)

    print("KERNEL_OK")
</pallas_src>

<mosaic_0001>
module attributes {stable_mosaic.version = 11 : i64} {
  func.func @_matmul_bias_act_kernel(%arg0: i32, %arg1: memref<512x128xf32, #tpu.memory_space<vmem>>, %arg2: memref<128x128xf32, #tpu.memory_space<vmem>>, %arg3: memref<1x128xf32, #tpu.memory_space<vmem>>, %arg4: memref<512x128xf32, #tpu.memory_space<vmem>>) attributes {dimension_semantics = [#tpu.dimension_semantics<parallel>], iteration_bounds = array<i64: 1>, scalar_prefetch = 0 : i64, scratch_operands = 0 : i64, tpu.core_type = #tpu.core_type<tc>, window_params = [{transform_indices = @transform_0, window_bounds = array<i64: 512, 128>}, {pipeline_mode = #tpu.pipeline_mode<synchronous>, transform_indices = @transform_1, window_bounds = array<i64: 128, 128>}, {pipeline_mode = #tpu.pipeline_mode<synchronous>, transform_indices = @transform_2, window_bounds = array<i64: 1, 128>}, {transform_indices = @transform_3, window_bounds = array<i64: 512, 128>}]} {
    %c0 = arith.constant 0 : index
    %c0_0 = arith.constant 0 : index
    %0 = vector.load %arg1[%c0, %c0_0] : memref<512x128xf32, #tpu.memory_space<vmem>>, vector<512x128xf32>
    %c0_1 = arith.constant 0 : index
    %c0_2 = arith.constant 0 : index
    %1 = vector.load %arg2[%c0_1, %c0_2] : memref<128x128xf32, #tpu.memory_space<vmem>>, vector<128x128xf32>
    %cst = arith.constant dense<0.000000e+00> : vector<512x128xf32>
    %2 = tpu.matmul %0, %1, %cst {dimension_numbers = #tpu.dot_dimension_numbers<[1], [0], [0], [1], [0, 0, 1, 1], [], []>} : vector<512x128xf32>, vector<128x128xf32>, vector<512x128xf32> -> vector<512x128xf32>
    %c0_3 = arith.constant 0 : index
    %c0_4 = arith.constant 0 : index
    %3 = vector.load %arg3[%c0_3, %c0_4] : memref<1x128xf32, #tpu.memory_space<vmem>>, vector<1x128xf32>
    %4 = vector.broadcast %3 : vector<1x128xf32> to vector<512x128xf32>
    %5 = arith.addf %2, %4 : vector<512x128xf32>
    %cst_5 = arith.constant 0.000000e+00 : f32
    %6 = vector.broadcast %cst_5 : f32 to vector<512x128xf32>
    %7 = arith.maximumf %5, %6 : vector<512x128xf32>
    %c0_6 = arith.constant 0 : index
    %c0_7 = arith.constant 0 : index
    %8 = vector.load %arg4[%c0_6, %c0_7] : memref<512x128xf32, #tpu.memory_space<vmem>>, vector<512x128xf32>
    tpu.vector_store %arg4[%c0_6, %c0_7], %7 {strides = array<i32>} : memref<512x128xf32, #tpu.memory_space<vmem>>, vector<512x128xf32>,
    return
  }
  func.func @transform_0(%arg0: i32) -> (i32, i32) {
    %c0_i32 = arith.constant 0 : i32
    %c0_i32_0 = arith.constant 0 : i32
    return %arg0, %c0_i32 : i32, i32
  }
  func.func @transform_1(%arg0: i32) -> (i32, i32) {
    %c0_i32 = arith.constant 0 : i32
    %c0_i32_0 = arith.constant 0 : i32
    %c0_i32_1 = arith.constant 0 : i32
    return %c0_i32, %c0_i32_0 : i32, i32
  }
  func.func @transform_2(%arg0: i32) -> (i32, i32) {
    %c0_i32 = arith.constant 0 : i32
    %c0_i32_0 = arith.constant 0 : i32
    %c0_i32_1 = arith.constant 0 : i32
    return %c0_i32, %c0_i32_0 : i32, i32
  }
  func.func @transform_3(%arg0: i32) -> (i32, i32) {
    %c0_i32 = arith.constant 0 : i32
    %c0_i32_0 = arith.constant 0 : i32
    return %arg0, %c0_i32 : i32, i32
  }
}

</mosaic_0001>

<llo_original>
// kernel: conv2d_pallas.1
$region0: #{conv2d_pallas.1}
  #allocation0 [shape = 'u32[]', space=smem, size = 0x4, offset = 0x4, fixed_abs, tag = 'smem constant byte address 0x4 - core index']
  #allocation1 [shape = 'u32[72,128]{1,0:T(1,128)}', space=vmem, size = 0x9000, scoped, tag = 'internal scratch']
  %s0 = inlined_call_operand.vmem [shape: f32[512,128], index: 0, kind: input, shape index: {}]
  %s1 = inlined_call_operand.vmem [shape: f32[128,128], index: 1, kind: input, shape index: {}]
  %s2 = inlined_call_operand.vmem [shape: f32[1,128], index: 2, kind: input, shape index: {}]
  %s3 = inlined_call_operand.vmem [shape: f32[512,128], index: 3, kind: output, shape index: {}]
  %s4 = sld [smem:[#allocation0]]
  $region22: #{conv2d_pallas.1} parent=0
    _
  %s6 = ssub.s32 1, %s4
  %s7 = scalar_select 0, %s6, %s4
  // Predicated region
  $region2: #{conv2d_pallas.1} parent=0 // pred_check
    _
  $region3: #{conv2d_pallas.1} parent=0 // pred_check_branch
    %9 = sbr.rel (0) target = $region5
  $region4: #{conv2d_pallas.1} parent=0 // pred_region
    _
  $region5: #{conv2d_pallas.1} parent=0 // pred_fallthru
    _
  // Predicated region
  $region6: #{conv2d_pallas.1} parent=0 // pred_check
    _
  $region7: #{conv2d_pallas.1} parent=0 // pred_check_branch
    %11 = sbr.rel (0) target = $region9
  $region8: #{conv2d_pallas.1} parent=0 // pred_region
    _
  $region9: #{conv2d_pallas.1} parent=0 // pred_fallthru
    _
  // Predicated region
  $region10: #{conv2d_pallas.1} parent=0 // pred_check
    _
  $region11: #{conv2d_pallas.1} parent=0 // pred_check_branch
    %13 = sbr.rel (0) target = $region13
  $region12: #{conv2d_pallas.1} parent=0 // pred_region
    _
  $region13: #{conv2d_pallas.1} parent=0 // pred_fallthru
    _
  %v14 = vld [vmem:[%s0] sm:$0xff]
  %v15 = vld [vmem:[%s0 + $0x8] sm:$0xff]
  %v16 = vld [vmem:[%s0 + $0x10] sm:$0xff]
  %v17 = vld [vmem:[%s0 + $0x18] sm:$0xff]
  %v18 = vld [vmem:[%s0 + $0x20] sm:$0xff]
  %v19 = vld [vmem:[%s0 + $0x28] sm:$0xff]
  %v20 = vld [vmem:[%s0 + $0x30] sm:$0xff]
  %v21 = vld [vmem:[%s0 + $0x38] sm:$0xff]
  %v22 = vld [vmem:[%s0 + $0x40] sm:$0xff]
  %v23 = vld [vmem:[%s0 + $0x48] sm:$0xff]
  %v24 = vld [vmem:[%s0 + $0x50] sm:$0xff]
  %v25 = vld [vmem:[%s0 + $0x58] sm:$0xff]
  %v26 = vld [vmem:[%s0 + $0x60] sm:$0xff]
  %v27 = vld [vmem:[%s0 + $0x68] sm:$0xff]
  %v28 = vld [vmem:[%s0 + $0x70] sm:$0xff]
  %v29 = vld [vmem:[%s0 + $0x78] sm:$0xff]
  %v30 = vld [vmem:[%s0 + $0x80] sm:$0xff]
  %v31 = vld [vmem:[%s0 + $0x88] sm:$0xff]
  %v32 = vld [vmem:[%s0 + $0x90] sm:$0xff]
  %v33 = vld [vmem:[%s0 + $0x98] sm:$0xff]
  %v34 = vld [vmem:[%s0 + $0xa0] sm:$0xff]
  %v35 = vld [vmem:[%s0 + $0xa8] sm:$0xff]
  %v36 = vld [vmem:[%s0 + $0xb0] sm:$0xff]
  %v37 = vld [vmem:[%s0 + $0xb8] sm:$0xff]
  %v38 = vld [vmem:[%s0 + $0xc0] sm:$0xff]
  %v39 = vld [vmem:[%s0 + $0xc8] sm:$0xff]
  %v40 = vld [vmem:[%s0 + $0xd0] sm:$0xff]
  %v41 = vld [vmem:[%s0 + $0xd8] sm:$0xff]
  %v42 = vld [vmem:[%s0 + $0xe0] sm:$0xff]
  %v43 = vld [vmem:[%s0 + $0xe8] sm:$0xff]
  %v44 = vld [vmem:[%s0 + $0xf0] sm:$0xff]
  %v45 = vld [vmem:[%s0 + $0xf8] sm:$0xff]
  %v46 = vld [vmem:[%s0 + $0x100] sm:$0xff]
  %v47 = vld [vmem:[%s0 + $0x108] sm:$0xff]
  %v48 = vld [vmem:[%s0 + $0x110] sm:$0xff]
  %v49 = vld [vmem:[%s0 + $0x118] sm:$0xff]
  %v50 = vld [vmem:[%s0 + $0x120] sm:$0xff]
  %v51 = vld [vmem:[%s0 + $0x128] sm:$0xff]
  %v52 = vld [vmem:[%s0 + $0x130] sm:$0xff]
  %v53 = vld [vmem:[%s0 + $0x138] sm:$0xff]
  %v54 = vld [vmem:[%s0 + $0x140] sm:$0xff]
  %v55 = vld [vmem:[%s0 + $0x148] sm:$0xff]
  %v56 = vld [vmem:[%s0 + $0x150] sm:$0xff]
  %v57 = vld [vmem:[%s0 + $0x158] sm:$0xff]
  %v58 = vld [vmem:[%s0 + $0x160] sm:$0xff]
  %v59 = vld [vmem:[%s0 + $0x168] sm:$0xff]
  %v60 = vld [vmem:[%s0 + $0x170] sm:$0xff]
  %v61 = vld [vmem:[%s0 + $0x178] sm:$0xff]
  %v62 = vld [vmem:[%s0 + $0x180] sm:$0xff]
  %v63 = vld [vmem:[%s0 + $0x188] sm:$0xff]
  %v64 = vld [vmem:[%s0 + $0x190] sm:$0xff]
  %v65 = vld [vmem:[%s0 + $0x198] sm:$0xff]
  %v66 = vld [vmem:[%s0 + $0x1a0] sm:$0xff]
  %v67 = vld [vmem:[%s0 + $0x1a8] sm:$0xff]
  %v68 = vld [vmem:[%s0 + $0x1b0] sm:$0xff]
  %v69 = vld [vmem:[%s0 + $0x1b8] sm:$0xff]
  %v70 = vld [vmem:[%s0 + $0x1c0] sm:$0xff]
  %v71 = vld [vmem:[%s0 + $0x1c8] sm:$0xff]
  %v72 = vld [vmem:[%s0 + $0x1d0] sm:$0xff]
  %v73 = vld [vmem:[%s0 + $0x1d8] sm:$0xff]
  %v74 = vld [vmem:[%s0 + $0x1e0] sm:$0xff]
  %v75 = vld [vmem:[%s0 + $0x1e8] sm:$0xff]
  %v76 = vld [vmem:[%s0 + $0x1f0] sm:$0xff]
  %v77 = vld [vmem:[%s0 + $0x1f8] sm:$0xff]
  %v78 = vld [vmem:[%s1] sm:$0xff]
  %v79 = vld [vmem:[%s1 + $0x8] sm:$0xff]
  %v80 = vld [vmem:[%s1 + $0x10] sm:$0xff]
  %v81 = vld [vmem:[%s1 + $0x18] sm:$0xff]
  %v82 = vld [vmem:[%s1 + $0x20] sm:$0xff]
  %v83 = vld [vmem:[%s1 + $0x28] sm:$0xff]
  %v84 = vld [vmem:[%s1 + $0x30] sm:$0xff]
  %v85 = vld [vmem:[%s1 + $0x38] sm:$0xff]
  %v86 = vld [vmem:[%s1 + $0x40] sm:$0xff]
  %v87 = vld [vmem:[%s1 + $0x48] sm:$0xff]
  %v88 = vld [vmem:[%s1 + $0x50] sm:$0xff]
  %v89 = vld [vmem:[%s1 + $0x58] sm:$0xff]
  %v90 = vld [vmem:[%s1 + $0x60] sm:$0xff]
  %v91 = vld [vmem:[%s1 + $0x68] sm:$0xff]
  %v92 = vld [vmem:[%s1 + $0x70] sm:$0xff]
  %v93 = vld [vmem:[%s1 + $0x78] sm:$0xff]
  %v94 = vld [vmem:[%s2] sm:$0x1]
  %v96 = vperm.slane %v94, 0
  %98 = vmatpush.msra.mxu0 %v93
  %99 = vmatpush.msra.mxu0 %v92
  %100 = vmatpush.msra.mxu0 %v91
  %101 = vmatpush.msra.mxu0 %v90
  %102 = vmatpush.msra.mxu0 %v89
  %103 = vmatpush.msra.mxu0 %v88
  %104 = vmatpush.msra.mxu0 %v87
  %105 = vmatpush.msra.mxu0 %v86
  %106 = vmatpush.msra.mxu0 %v85
  %107 = vmatpush.msra.mxu0 %v84
  %108 = vmatpush.msra.mxu0 %v83
  %109 = vmatpush.msra.mxu0 %v82
  %110 = vmatpush.msra.mxu0 %v81
  %111 = vmatpush.msra.mxu0 %v80
  %112 = vmatpush.msra.mxu0 %v79
  %113 = vmatpush.msra.mxu0 %v78
  %114 = vmatmul.f32.gmra.mxu0 %v14
  %v115 = vpop.f32.mrf.mxu0
  %v116 = vadd.f32 %v96, %v115
  %117 = vmatmul.f32.gmra.mxu0 %v15
  %v118 = vpop.f32.mrf.mxu0
  %v119 = vadd.f32 %v96, %v118
  %120 = vmatmul.f32.gmra.mxu0 %v16
  %v121 = vpop.f32.mrf.mxu0
  %v122 = vadd.f32 %v96, %v121
  %123 = vmatmul.f32.gmra.mxu0 %v17
  %v124 = vpop.f32.mrf.mxu0
  %v125 = vadd.f32 %v96, %v124
  %126 = vmatmul.f32.gmra.mxu0 %v18
  %v127 = vpop.f32.mrf.mxu0
  %v128 = vadd.f32 %v96, %v127
  %129 = vmatmul.f32.gmra.mxu0 %v19
  %v130 = vpop.f32.mrf.mxu0
  %v131 = vadd.f32 %v96, %v130
  %132 = vmatmul.f32.gmra.mxu0 %v20
  %v133 = vpop.f32.mrf.mxu0
  %v134 = vadd.f32 %v96, %v133
  %135 = vmatmul.f32.gmra.mxu0 %v21
  %v136 = vpop.f32.mrf.mxu0
  %v137 = vadd.f32 %v96, %v136
  %138 = vmatmul.f32.gmra.mxu0 %v22
  %v139 = vpop.f32.mrf.mxu0
  %v140 = vadd.f32 %v96, %v139
  %141 = vmatmul.f32.gmra.mxu0 %v23
  %v142 = vpop.f32.mrf.mxu0
  %v143 = vadd.f32 %v96, %v142
  %144 = vmatmul.f32.gmra.mxu0 %v24
  %v145 = vpop.f32.mrf.mxu0
  %v146 = vadd.f32 %v96, %v145
  %147 = vmatmul.f32.gmra.mxu0 %v25
  %v148 = vpop.f32.mrf.mxu0
  %v149 = vadd.f32 %v96, %v148
  %150 = vmatmul.f32.gmra.mxu0 %v26
  %v151 = vpop.f32.mrf.mxu0
  %v152 = vadd.f32 %v96, %v151
  %153 = vmatmul.f32.gmra.mxu0 %v27
  %v154 = vpop.f32.mrf.mxu0
  %v155 = vadd.f32 %v96, %v154
  %156 = vmatmul.f32.gmra.mxu0 %v28
  %v157 = vpop.f32.mrf.mxu0
  %v158 = vadd.f32 %v96, %v157
  %159 = vmatmul.f32.gmra.mxu0 %v29
  %v160 = vpop.f32.mrf.mxu0
  %v161 = vadd.f32 %v96, %v160
  %162 = vmatmul.f32.gmra.mxu0 %v30
  %v163 = vpop.f32.mrf.mxu0
  %v164 = vadd.f32 %v96, %v163
  %165 = vmatmul.f32.gmra.mxu0 %v31
  %v166 = vpop.f32.mrf.mxu0
  %v167 = vadd.f32 %v96, %v166
  %168 = vmatmul.f32.gmra.mxu0 %v32
  %v169 = vpop.f32.mrf.mxu0
  %v170 = vadd.f32 %v96, %v169
  %171 = vmatmul.f32.gmra.mxu0 %v33
  %v172 = vpop.f32.mrf.mxu0
  %v173 = vadd.f32 %v96, %v172
  %174 = vmatmul.f32.gmra.mxu0 %v34
  %v175 = vpop.f32.mrf.mxu0
  %v176 = vadd.f32 %v96, %v175
  %177 = vmatmul.f32.gmra.mxu0 %v35
  %v178 = vpop.f32.mrf.mxu0
  %v179 = vadd.f32 %v96, %v178
  %180 = vmatmul.f32.gmra.mxu0 %v36
  %v181 = vpop.f32.mrf.mxu0
  %v182 = vadd.f32 %v96, %v181
  %183 = vmatmul.f32.gmra.mxu0 %v37
  %v184 = vpop.f32.mrf.mxu0
  %v185 = vadd.f32 %v96, %v184
  %186 = vmatmul.f32.gmra.mxu0 %v38
  %v187 = vpop.f32.mrf.mxu0
  %v188 = vadd.f32 %v96, %v187
  %189 = vmatmul.f32.gmra.mxu0 %v39
  %v190 = vpop.f32.mrf.mxu0
  %v191 = vadd.f32 %v96, %v190
  %192 = vmatmul.f32.gmra.mxu0 %v40
  %v193 = vpop.f32.mrf.mxu0
  %v194 = vadd.f32 %v96, %v193
  %195 = vmatmul.f32.gmra.mxu0 %v41
  %v196 = vpop.f32.mrf.mxu0
  %v197 = vadd.f32 %v96, %v196
  %198 = vmatmul.f32.gmra.mxu0 %v42
  %v199 = vpop.f32.mrf.mxu0
  %v200 = vadd.f32 %v96, %v199
  %201 = vmatmul.f32.gmra.mxu0 %v43
  %v202 = vpop.f32.mrf.mxu0
  %v203 = vadd.f32 %v96, %v202
  %204 = vmatmul.f32.gmra.mxu0 %v44
  %v205 = vpop.f32.mrf.mxu0
  %v206 = vadd.f32 %v96, %v205
  %207 = vmatmul.f32.gmra.mxu0 %v45
  %v208 = vpop.f32.mrf.mxu0
  %v209 = vadd.f32 %v96, %v208
  %210 = vmatmul.f32.gmra.mxu0 %v46
  %v211 = vpop.f32.mrf.mxu0
  %v212 = vadd.f32 %v96, %v211
  %213 = vmatmul.f32.gmra.mxu0 %v47
  %v214 = vpop.f32.mrf.mxu0
  %v215 = vadd.f32 %v96, %v214
  %216 = vmatmul.f32.gmra.mxu0 %v48
  %v217 = vpop.f32.mrf.mxu0
  %v218 = vadd.f32 %v96, %v217
  %219 = vmatmul.f32.gmra.mxu0 %v49
  %v220 = vpop.f32.mrf.mxu0
  %v221 = vadd.f32 %v96, %v220
  %222 = vmatmul.f32.gmra.mxu0 %v50
  %v223 = vpop.f32.mrf.mxu0
  %v224 = vadd.f32 %v96, %v223
  %225 = vmatmul.f32.gmra.mxu0 %v51
  %v226 = vpop.f32.mrf.mxu0
  %v227 = vadd.f32 %v96, %v226
  %228 = vmatmul.f32.gmra.mxu0 %v52
  %v229 = vpop.f32.mrf.mxu0
  %v230 = vadd.f32 %v96, %v229
  %231 = vmatmul.f32.gmra.mxu0 %v53
  %v232 = vpop.f32.mrf.mxu0
  %v233 = vadd.f32 %v96, %v232
  %234 = vmatmul.f32.gmra.mxu0 %v54
  %v235 = vpop.f32.mrf.mxu0
  %v236 = vadd.f32 %v96, %v235
  %237 = vmatmul.f32.gmra.mxu0 %v55
  %v238 = vpop.f32.mrf.mxu0
  %v239 = vadd.f32 %v96, %v238
  %240 = vmatmul.f32.gmra.mxu0 %v56
  %v241 = vpop.f32.mrf.mxu0
  %v242 = vadd.f32 %v96, %v241
  %243 = vmatmul.f32.gmra.mxu0 %v57
  %v244 = vpop.f32.mrf.mxu0
  %v245 = vadd.f32 %v96, %v244
  %246 = vmatmul.f32.gmra.mxu0 %v58
  %v247 = vpop.f32.mrf.mxu0
  %v248 = vadd.f32 %v96, %v247
  %249 = vmatmul.f32.gmra.mxu0 %v59
  %v250 = vpop.f32.mrf.mxu0
  %v251 = vadd.f32 %v96, %v250
  %252 = vmatmul.f32.gmra.mxu0 %v60
  %v253 = vpop.f32.mrf.mxu0
  %v254 = vadd.f32 %v96, %v253
  %255 = vmatmul.f32.gmra.mxu0 %v61
  %v256 = vpop.f32.mrf.mxu0
  %v257 = vadd.f32 %v96, %v256
  %258 = vmatmul.f32.gmra.mxu0 %v62
  %v259 = vpop.f32.mrf.mxu0
  %v260 = vadd.f32 %v96, %v259
  %261 = vmatmul.f32.gmra.mxu0 %v63
  %v262 = vpop.f32.mrf.mxu0
  %v263 = vadd.f32 %v96, %v262
  %264 = vmatmul.f32.gmra.mxu0 %v64
  %v265 = vpop.f32.mrf.mxu0
  %v266 = vadd.f32 %v96, %v265
  %267 = vmatmul.f32.gmra.mxu0 %v65
  %v268 = vpop.f32.mrf.mxu0
  %v269 = vadd.f32 %v96, %v268
  %270 = vmatmul.f32.gmra.mxu0 %v66
  %v271 = vpop.f32.mrf.mxu0
  %v272 = vadd.f32 %v96, %v271
  %273 = vmatmul.f32.gmra.mxu0 %v67
  %v274 = vpop.f32.mrf.mxu0
  %v275 = vadd.f32 %v96, %v274
  %276 = vmatmul.f32.gmra.mxu0 %v68
  %v277 = vpop.f32.mrf.mxu0
  %v278 = vadd.f32 %v96, %v277
  %279 = vmatmul.f32.gmra.mxu0 %v69
  %v280 = vpop.f32.mrf.mxu0
  %v281 = vadd.f32 %v96, %v280
  %282 = vmatmul.f32.gmra.mxu0 %v70
  %v283 = vpop.f32.mrf.mxu0
  %v284 = vadd.f32 %v96, %v283
  %285 = vmatmul.f32.gmra.mxu0 %v71
  %v286 = vpop.f32.mrf.mxu0
  %v287 = vadd.f32 %v96, %v286
  %288 = vmatmul.f32.gmra.mxu0 %v72
  %v289 = vpop.f32.mrf.mxu0
  %v290 = vadd.f32 %v96, %v289
  %291 = vmatmul.f32.gmra.mxu0 %v73
  %v292 = vpop.f32.mrf.mxu0
  %v293 = vadd.f32 %v96, %v292
  %294 = vmatmul.f32.gmra.mxu0 %v74
  %v295 = vpop.f32.mrf.mxu0
  %v296 = vadd.f32 %v96, %v295
  %297 = vmatmul.f32.gmra.mxu0 %v75
  %v298 = vpop.f32.mrf.mxu0
  %v299 = vadd.f32 %v96, %v298
  %300 = vmatmul.f32.gmra.mxu0 %v76
  %v301 = vpop.f32.mrf.mxu0
  %v302 = vadd.f32 %v96, %v301
  %303 = vmatmul.f32.gmra.mxu0 %v77
  %v304 = vpop.f32.mrf.mxu0
  %v305 = vadd.f32 %v96, %v304
  %306 = vdwg.mxu0
  %v307 = vmax.f32 %v116, 0.0
  %v308 = vmax.f32 %v119, 0.0
  %v309 = vmax.f32 %v122, 0.0
  %v310 = vmax.f32 %v125, 0.0
  %v311 = vmax.f32 %v128, 0.0
  %v312 = vmax.f32 %v131, 0.0
  %v313 = vmax.f32 %v134, 0.0
  %v314 = vmax.f32 %v137, 0.0
  %v315 = vmax.f32 %v140, 0.0
  %v316 = vmax.f32 %v143, 0.0
  %v317 = vmax.f32 %v146, 0.0
  %v318 = vmax.f32 %v149, 0.0
  %v319 = vmax.f32 %v152, 0.0
  %v320 = vmax.f32 %v155, 0.0
  %v321 = vmax.f32 %v158, 0.0
  %v322 = vmax.f32 %v161, 0.0
  %v323 = vmax.f32 %v164, 0.0
  %v324 = vmax.f32 %v167, 0.0
  %v325 = vmax.f32 %v170, 0.0
  %v326 = vmax.f32 %v173, 0.0
  %v327 = vmax.f32 %v176, 0.0
  %v328 = vmax.f32 %v179, 0.0
  %v329 = vmax.f32 %v182, 0.0
  %v330 = vmax.f32 %v185, 0.0
  %v331 = vmax.f32 %v188, 0.0
  %v332 = vmax.f32 %v191, 0.0
  %v333 = vmax.f32 %v194, 0.0
  %v334 = vmax.f32 %v197, 0.0
  %v335 = vmax.f32 %v200, 0.0
  %v336 = vmax.f32 %v203, 0.0
  %v337 = vmax.f32 %v206, 0.0
  %v338 = vmax.f32 %v209, 0.0
  %v339 = vmax.f32 %v212, 0.0
  %v340 = vmax.f32 %v215, 0.0
  %v341 = vmax.f32 %v218, 0.0
  %v342 = vmax.f32 %v221, 0.0
  %v343 = vmax.f32 %v224, 0.0
  %v344 = vmax.f32 %v227, 0.0
  %v345 = vmax.f32 %v230, 0.0
  %v346 = vmax.f32 %v233, 0.0
  %v347 = vmax.f32 %v236, 0.0
  %v348 = vmax.f32 %v239, 0.0
  %v349 = vmax.f32 %v242, 0.0
  %v350 = vmax.f32 %v245, 0.0
  %v351 = vmax.f32 %v248, 0.0
  %v352 = vmax.f32 %v251, 0.0
  %v353 = vmax.f32 %v254, 0.0
  %v354 = vmax.f32 %v257, 0.0
  %v355 = vmax.f32 %v260, 0.0
  %v356 = vmax.f32 %v263, 0.0
  %v357 = vmax.f32 %v266, 0.0
  %v358 = vmax.f32 %v269, 0.0
  %v359 = vmax.f32 %v272, 0.0
  %v360 = vmax.f32 %v275, 0.0
  %v361 = vmax.f32 %v278, 0.0
  %v362 = vmax.f32 %v281, 0.0
  %v363 = vmax.f32 %v284, 0.0
  %v364 = vmax.f32 %v287, 0.0
  %v365 = vmax.f32 %v290, 0.0
  %v366 = vmax.f32 %v293, 0.0
  %v367 = vmax.f32 %v296, 0.0
  %v368 = vmax.f32 %v299, 0.0
  %v369 = vmax.f32 %v302, 0.0
  %v370 = vmax.f32 %v305, 0.0
  %371 = vst [vmem:[%s3] sm:$0xff] %v307
  %372 = vst [vmem:[%s3 + $0x8] sm:$0xff] %v308
  %373 = vst [vmem:[%s3 + $0x10] sm:$0xff] %v309
  %374 = vst [vmem:[%s3 + $0x18] sm:$0xff] %v310
  %375 = vst [vmem:[%s3 + $0x20] sm:$0xff] %v311
  %376 = vst [vmem:[%s3 + $0x28] sm:$0xff] %v312
  %377 = vst [vmem:[%s3 + $0x30] sm:$0xff] %v313
  %378 = vst [vmem:[%s3 + $0x38] sm:$0xff] %v314
  %379 = vst [vmem:[%s3 + $0x40] sm:$0xff] %v315
  %380 = vst [vmem:[%s3 + $0x48] sm:$0xff] %v316
  %381 = vst [vmem:[%s3 + $0x50] sm:$0xff] %v317
  %382 = vst [vmem:[%s3 + $0x58] sm:$0xff] %v318
  %383 = vst [vmem:[%s3 + $0x60] sm:$0xff] %v319
  %384 = vst [vmem:[%s3 + $0x68] sm:$0xff] %v320
  %385 = vst [vmem:[%s3 + $0x70] sm:$0xff] %v321
  %386 = vst [vmem:[%s3 + $0x78] sm:$0xff] %v322
  %387 = vst [vmem:[%s3 + $0x80] sm:$0xff] %v323
  %388 = vst [vmem:[%s3 + $0x88] sm:$0xff] %v324
  %389 = vst [vmem:[%s3 + $0x90] sm:$0xff] %v325
  %390 = vst [vmem:[%s3 + $0x98] sm:$0xff] %v326
  %391 = vst [vmem:[%s3 + $0xa0] sm:$0xff] %v327
  %392 = vst [vmem:[%s3 + $0xa8] sm:$0xff] %v328
  %393 = vst [vmem:[%s3 + $0xb0] sm:$0xff] %v329
  %394 = vst [vmem:[%s3 + $0xb8] sm:$0xff] %v330
  %395 = vst [vmem:[%s3 + $0xc0] sm:$0xff] %v331
  %396 = vst [vmem:[%s3 + $0xc8] sm:$0xff] %v332
  %397 = vst [vmem:[%s3 + $0xd0] sm:$0xff] %v333
  %398 = vst [vmem:[%s3 + $0xd8] sm:$0xff] %v334
  %399 = vst [vmem:[%s3 + $0xe0] sm:$0xff] %v335
  %400 = vst [vmem:[%s3 + $0xe8] sm:$0xff] %v336
  %401 = vst [vmem:[%s3 + $0xf0] sm:$0xff] %v337
  %402 = vst [vmem:[%s3 + $0xf8] sm:$0xff] %v338
  %403 = vst [vmem:[%s3 + $0x100] sm:$0xff] %v339
  %404 = vst [vmem:[%s3 + $0x108] sm:$0xff] %v340
  %405 = vst [vmem:[%s3 + $0x110] sm:$0xff] %v341
  %406 = vst [vmem:[%s3 + $0x118] sm:$0xff] %v342
  %407 = vst [vmem:[%s3 + $0x120] sm:$0xff] %v343
  %408 = vst [vmem:[%s3 + $0x128] sm:$0xff] %v344
  %409 = vst [vmem:[%s3 + $0x130] sm:$0xff] %v345
  %410 = vst [vmem:[%s3 + $0x138] sm:$0xff] %v346
  %411 = vst [vmem:[%s3 + $0x140] sm:$0xff] %v347
  %412 = vst [vmem:[%s3 + $0x148] sm:$0xff] %v348
  %413 = vst [vmem:[%s3 + $0x150] sm:$0xff] %v349
  %414 = vst [vmem:[%s3 + $0x158] sm:$0xff] %v350
  %415 = vst [vmem:[%s3 + $0x160] sm:$0xff] %v351
  %416 = vst [vmem:[%s3 + $0x168] sm:$0xff] %v352
  %417 = vst [vmem:[%s3 + $0x170] sm:$0xff] %v353
  %418 = vst [vmem:[%s3 + $0x178] sm:$0xff] %v354
  %419 = vst [vmem:[%s3 + $0x180] sm:$0xff] %v355
  %420 = vst [vmem:[%s3 + $0x188] sm:$0xff] %v356
  %421 = vst [vmem:[%s3 + $0x190] sm:$0xff] %v357
  %422 = vst [vmem:[%s3 + $0x198] sm:$0xff] %v358
  %423 = vst [vmem:[%s3 + $0x1a0] sm:$0xff] %v359
  %424 = vst [vmem:[%s3 + $0x1a8] sm:$0xff] %v360
  %425 = vst [vmem:[%s3 + $0x1b0] sm:$0xff] %v361
  %426 = vst [vmem:[%s3 + $0x1b8] sm:$0xff] %v362
  %427 = vst [vmem:[%s3 + $0x1c0] sm:$0xff] %v363
  %428 = vst [vmem:[%s3 + $0x1c8] sm:$0xff] %v364
  %429 = vst [vmem:[%s3 + $0x1d0] sm:$0xff] %v365
  %430 = vst [vmem:[%s3 + $0x1d8] sm:$0xff] %v366
  %431 = vst [vmem:[%s3 + $0x1e0] sm:$0xff] %v367
  %432 = vst [vmem:[%s3 + $0x1e8] sm:$0xff] %v368
  %433 = vst [vmem:[%s3 + $0x1f0] sm:$0xff] %v369
  %434 = vst [vmem:[%s3 + $0x1f8] sm:$0xff] %v370
  // Predicated region
  $region14: #{conv2d_pallas.1} parent=0 // pred_check
    _
  $region15: #{conv2d_pallas.1} parent=0 // pred_check_branch
    %436 = sbr.rel (0) target = $region17
  $region16: #{conv2d_pallas.1} parent=0 // pred_region
    _
  $region17: #{conv2d_pallas.1} parent=0 // pred_fallthru
    _
  // Predicated region
  $region18: #{conv2d_pallas.1} parent=0 // pred_check
    _
  $region19: #{conv2d_pallas.1} parent=0 // pred_check_branch
    %438 = sbr.rel (0) target = $region21
  $region20: #{conv2d_pallas.1} parent=0 // pred_region
    _
  $region21: #{conv2d_pallas.1} parent=0 // pred_fallthru
    _

</llo_original>
